<compile_context>
chip_gen: v7x
topology: tpu7x:2x2x1
jax: 0.10.0
libtpu: 0.0.40
codegen_flags: <defaults>
</compile_context>

<pallas_src>
import jax
import jax.numpy as jnp
from jax.experimental import pallas as pl
from jax.experimental.pallas import tpu as pltpu


# ----------------------------------------------------------------------------
# Pallas kernel: fused point-wise MLP + output transpose to NCW layout
# ----------------------------------------------------------------------------
def _make_encoder_kernel(n_layers):
    def kernel(*refs):
        kpts_ref, scores_ref = refs[0], refs[1]   # (1, tile_n, 2), (1, tile_n, 1)
        o_ref = refs[-1]                          # (1, F, tile_n)
        p = refs[2:-1]                            # w0,b0,w1,b1,...

        kx = kpts_ref[0].astype(jnp.float32)      # (tile_n, 2)
        sc = scores_ref[0].astype(jnp.float32)    # (tile_n, 1)

        # Layer 0 (3 -> C1): K=3 matmul replaced with VPU broadcast-FMAs.
        w0 = p[0][...].astype(jnp.float32)        # (3, C1)
        b0 = p[1][...]                            # (1, C1)
        h = (kx[:, 0:1] * w0[0:1, :]
             + kx[:, 1:2] * w0[1:2, :]
             + sc * w0[2:3, :]
             + b0)
        if n_layers > 1:
            h = jnp.maximum(h, 0.0)

        # Hidden / final layers on the MXU (bf16 inputs, f32 accumulation).
        for li in range(1, n_layers):
            w = p[2 * li][...]                    # (C_in, C_out), bf16
            b = p[2 * li + 1][...]                # (1, C_out), f32
            h = jnp.dot(h.astype(w.dtype), w,
                        preferred_element_type=jnp.float32) + b
            if li < n_layers - 1:
                h = jnp.maximum(h, 0.0)

        # Fused NCW transpose: (tile_n, F) -> (F, tile_n), lane-dense store.
        o_ref[0] = jnp.transpose(h).astype(o_ref.dtype)

    return kernel


def _pick_tile_n(N, B):
    """Prefer minimal padding, then a total grid >= 2 (v7x), then bigger tiles."""
    candidates = (1024, 512, 256, 128)

    def score(t):
        n_pad = -(-N // t) * t
        steps = B * (n_pad // t)
        return (n_pad - N, 0 if steps >= 2 else 1, -t)

    return min(candidates, key=score)


def _encoder_pallas(kpts, scores3, flat_params, layer_sizes, tile_n, out_dtype):
    """kpts: (B, N_pad, 2), scores3: (B, N_pad, 1) -> (B, F, N_pad)."""
    B, n_pad, _ = kpts.shape
    F = layer_sizes[-1]
    n_layers = len(layer_sizes) - 1
    grid = (B, n_pad // tile_n)

    in_specs = [
        pl.BlockSpec((1, tile_n, 2), lambda b, j: (b, j, 0)),
        pl.BlockSpec((1, tile_n, 1), lambda b, j: (b, j, 0)),
    ]
    # Parameters: full-array blocks, resident across the grid.
    for prm in flat_params:
        in_specs.append(pl.BlockSpec(prm.shape, lambda b, j: (0, 0)))

    out_spec = pl.BlockSpec((1, F, tile_n), lambda b, j: (b, 0, j))

    return pl.pallas_call(
        _make_encoder_kernel(n_layers),
        out_shape=jax.ShapeDtypeStruct((B, F, n_pad), out_dtype),
        grid_spec=pltpu.PrefetchScalarGridSpec(
            num_scalar_prefetch=0,
            grid=grid,
            in_specs=in_specs,
            out_specs=out_spec,
        ),
        compiler_params=pltpu.CompilerParams(
            dimension_semantics=("parallel", "parallel")),
    )(kpts, scores3, *flat_params)


# ----------------------------------------------------------------------------
# Parameter construction (mirrors PyTorch __init__; BN folded, MXU weights bf16)
# ----------------------------------------------------------------------------
def init_keypoint_encoder_params(key, feature_dim, layers, *, do_bn=True,
                                 matmul_dtype=jnp.bfloat16):
    sizes = [3] + list(layers) + [feature_dim]
    n_layers = len(sizes) - 1
    eps = 1e-5
    flat = []
    for li in range(n_layers):
        c_in, c_out = sizes[li], sizes[li + 1]
        key, kw, kb = jax.random.split(key, 3)
        # Conv1d(k=1) weight (C_out, C_in, 1) stored transposed as (C_in, C_out).
        bound = 1.0 / float(c_in) ** 0.5
        w = jax.random.uniform(kw, (c_in, c_out), jnp.float32, -bound, bound)
        if li == n_layers - 1:
            b = jnp.zeros((1, c_out), jnp.float32)      # nn.init.constant_(bias, 0)
        else:
            b = jax.random.uniform(kb, (1, c_out), jnp.float32, -bound, bound)
        if do_bn and li < n_layers - 1:
            # Eval-mode BN (gamma=1, beta=0, mean=0, var=1) folded into w, b.
            s = 1.0 / jnp.sqrt(jnp.float32(1.0 + eps))
            w = w * s
            b = b * s
        if li > 0:
            # Hidden/final layers run on the MXU in bf16 (first layer stays f32 VPU).
            w = w.astype(matmul_dtype)
        flat += [w, b]
    return flat, sizes


# ----------------------------------------------------------------------------
# KeypointEncoder forward
# ----------------------------------------------------------------------------
def keypoint_encoder_forward(kpts, scores, flat_params, layer_sizes, *,
                             tile_n=None, out_dtype=jnp.float32):
    """kpts: (B, N, 2), scores: (B, N) -> (B, feature_dim, N)  (PyTorch NCW)."""
    B, N, _ = kpts.shape
    if tile_n is None:
        tile_n = _pick_tile_n(N, B)
    n_pad = -(-N // tile_n) * tile_n

    kpts_p = kpts.astype(jnp.float32)
    scores_p = scores.astype(jnp.float32)[..., None]          # (B, N, 1)
    if n_pad != N:
        kpts_p = jnp.pad(kpts_p, ((0, 0), (0, n_pad - N), (0, 0)))
        scores_p = jnp.pad(scores_p, ((0, 0), (0, n_pad - N), (0, 0)))

    out = _encoder_pallas(kpts_p, scores_p, flat_params, layer_sizes,
                          tile_n, out_dtype)                   # (B, F, n_pad)
    if n_pad != N:
        out = out[:, :, :N]
    return out


# ----------------------------------------------------------------------------
# Pure-JAX reference (same math: folded BN, f32 first layer, bf16 MXU layers)
# ----------------------------------------------------------------------------
def keypoint_encoder_ref(kpts, scores, flat_params, layer_sizes):
    B, N, _ = kpts.shape
    n_layers = len(layer_sizes) - 1
    x = jnp.concatenate([kpts, scores[..., None]], axis=-1)
    x = x.reshape(B * N, 3).astype(jnp.float32)

    w0 = flat_params[0].astype(jnp.float32)
    b0 = flat_params[1]
    h = (x[:, 0:1] * w0[0:1, :] + x[:, 1:2] * w0[1:2, :]
         + x[:, 2:3] * w0[2:3, :] + b0)
    if n_layers > 1:
        h = jnp.maximum(h, 0.0)
    for li in range(1, n_layers):
        w, b = flat_params[2 * li], flat_params[2 * li + 1]
        h = jnp.dot(h.astype(w.dtype), w,
                    preferred_element_type=jnp.float32) + b
        if li < n_layers - 1:
            h = jnp.maximum(h, 0.0)
    return h.reshape(B, N, layer_sizes[-1]).transpose(0, 2, 1)


if __name__ == "__main__":
    B, N = 2, 64                 # 2 images, 64 keypoints each
    feature_dim = 32
    layers = [16, 32]            # encoder channels: [3, 16, 32, 32]

    key = jax.random.PRNGKey(0)
    k_par, k_kpt, k_sc = jax.random.split(key, 3)

    flat_params, sizes = init_keypoint_encoder_params(k_par, feature_dim, layers)

    kpts = jax.random.uniform(k_kpt, (B, N, 2), jnp.float32, -1.0, 1.0)
    scores = jax.random.uniform(k_sc, (B, N), jnp.float32, 0.0, 1.0)

    out = keypoint_encoder_forward(kpts, scores, flat_params, sizes)
    out = jax.block_until_ready(out)

    ref = keypoint_encoder_ref(kpts, scores, flat_params, sizes)
    assert out.shape == (B, feature_dim, N), out.shape
    assert jnp.allclose(out, ref, atol=1e-3, rtol=1e-3), "mismatch vs reference"

    print("KERNEL_OK")
</pallas_src>

<mosaic_0001>
module attributes {stable_mosaic.version = 11 : i64} {
  func.func @kernel(%arg0: i32, %arg1: i32, %arg2: memref<1x128x2xf32, #tpu.memory_space<vmem>>, %arg3: memref<1x128x1xf32, #tpu.memory_space<vmem>>, %arg4: memref<3x16xf32, #tpu.memory_space<vmem>>, %arg5: memref<1x16xf32, #tpu.memory_space<vmem>>, %arg6: memref<16x32xbf16, #tpu.memory_space<vmem>>, %arg7: memref<1x32xf32, #tpu.memory_space<vmem>>, %arg8: memref<32x32xbf16, #tpu.memory_space<vmem>>, %arg9: memref<1x32xf32, #tpu.memory_space<vmem>>, %arg10: memref<1x32x128xf32, #tpu.memory_space<vmem>>) attributes {dimension_semantics = [#tpu.dimension_semantics<parallel>, #tpu.dimension_semantics<parallel>], iteration_bounds = array<i64: 2, 1>, scalar_prefetch = 0 : i64, scratch_operands = 0 : i64, tpu.core_type = #tpu.core_type<tc>, window_params = [{transform_indices = @transform_0, window_bounds = array<i64: 1, 128, 2>}, {transform_indices = @transform_1, window_bounds = array<i64: 1, 128, 1>}, {pipeline_mode = #tpu.pipeline_mode<synchronous>, transform_indices = @transform_2, window_bounds = array<i64: 3, 16>}, {pipeline_mode = #tpu.pipeline_mode<synchronous>, transform_indices = @transform_3, window_bounds = array<i64: 1, 16>}, {pipeline_mode = #tpu.pipeline_mode<synchronous>, transform_indices = @transform_4, window_bounds = array<i64: 16, 32>}, {pipeline_mode = #tpu.pipeline_mode<synchronous>, transform_indices = @transform_5, window_bounds = array<i64: 1, 32>}, {pipeline_mode = #tpu.pipeline_mode<synchronous>, transform_indices = @transform_6, window_bounds = array<i64: 32, 32>}, {pipeline_mode = #tpu.pipeline_mode<synchronous>, transform_indices = @transform_7, window_bounds = array<i64: 1, 32>}, {transform_indices = @transform_8, window_bounds = array<i64: 1, 32, 128>}]} {
    %c0 = arith.constant 0 : index
    %c0_0 = arith.constant 0 : index
    %c0_1 = arith.constant 0 : index
    %0 = vector.load %arg2[%c0, %c0_0, %c0_1] : memref<1x128x2xf32, #tpu.memory_space<vmem>>, vector<1x128x2xf32>
    %1 = vector.shape_cast %0 : vector<1x128x2xf32> to vector<128x2xf32>
    %c0_2 = arith.constant 0 : index
    %c0_3 = arith.constant 0 : index
    %c0_4 = arith.constant 0 : index
    %2 = vector.load %arg3[%c0_2, %c0_3, %c0_4] : memref<1x128x1xf32, #tpu.memory_space<vmem>>, vector<1x128x1xf32>
    %3 = vector.shape_cast %2 : vector<1x128x1xf32> to vector<128x1xf32>
    %c0_5 = arith.constant 0 : index
    %c0_6 = arith.constant 0 : index
    %4 = vector.load %arg4[%c0_5, %c0_6] : memref<3x16xf32, #tpu.memory_space<vmem>>, vector<3x16xf32>
    %c0_7 = arith.constant 0 : index
    %c0_8 = arith.constant 0 : index
    %5 = vector.load %arg5[%c0_7, %c0_8] : memref<1x16xf32, #tpu.memory_space<vmem>>, vector<1x16xf32>
    %6 = vector.extract_strided_slice %1 {offsets = [0, 0], sizes = [128, 1], strides = [1, 1]} : vector<128x2xf32> to vector<128x1xf32>
    %7 = vector.extract_strided_slice %4 {offsets = [0, 0], sizes = [1, 16], strides = [1, 1]} : vector<3x16xf32> to vector<1x16xf32>
    %8 = vector.broadcast %6 : vector<128x1xf32> to vector<128x16xf32>
    %9 = vector.broadcast %7 : vector<1x16xf32> to vector<128x16xf32>
    %10 = arith.mulf %8, %9 : vector<128x16xf32>
    %11 = vector.extract_strided_slice %1 {offsets = [0, 1], sizes = [128, 1], strides = [1, 1]} : vector<128x2xf32> to vector<128x1xf32>
    %12 = vector.extract_strided_slice %4 {offsets = [1, 0], sizes = [1, 16], strides = [1, 1]} : vector<3x16xf32> to vector<1x16xf32>
    %13 = vector.broadcast %11 : vector<128x1xf32> to vector<128x16xf32>
    %14 = vector.broadcast %12 : vector<1x16xf32> to vector<128x16xf32>
    %15 = arith.mulf %13, %14 : vector<128x16xf32>
    %16 = arith.addf %10, %15 : vector<128x16xf32>
    %17 = vector.extract_strided_slice %4 {offsets = [2, 0], sizes = [1, 16], strides = [1, 1]} : vector<3x16xf32> to vector<1x16xf32>
    %18 = vector.broadcast %3 : vector<128x1xf32> to vector<128x16xf32>
    %19 = vector.broadcast %17 : vector<1x16xf32> to vector<128x16xf32>
    %20 = arith.mulf %18, %19 : vector<128x16xf32>
    %21 = arith.addf %16, %20 : vector<128x16xf32>
    %22 = vector.broadcast %5 : vector<1x16xf32> to vector<128x16xf32>
    %23 = arith.addf %21, %22 : vector<128x16xf32>
    %cst = arith.constant 0.000000e+00 : f32
    %24 = vector.broadcast %cst : f32 to vector<128x16xf32>
    %25 = arith.maximumf %23, %24 : vector<128x16xf32>
    %c0_9 = arith.constant 0 : index
    %c0_10 = arith.constant 0 : index
    %26 = vector.load %arg6[%c0_9, %c0_10] : memref<16x32xbf16, #tpu.memory_space<vmem>>, vector<16x32xbf16>
    %c0_11 = arith.constant 0 : index
    %c0_12 = arith.constant 0 : index
    %27 = vector.load %arg7[%c0_11, %c0_12] : memref<1x32xf32, #tpu.memory_space<vmem>>, vector<1x32xf32>
    %28 = arith.truncf %25 : vector<128x16xf32> to vector<128x16xbf16>
    %cst_13 = arith.constant dense<0.000000e+00> : vector<128x32xf32>
    %29 = tpu.matmul %28, %26, %cst_13 {dimension_numbers = #tpu.dot_dimension_numbers<[1], [0], [0], [1], [0, 0, 1, 1], [], []>} : vector<128x16xbf16>, vector<16x32xbf16>, vector<128x32xf32> -> vector<128x32xf32>
    %30 = vector.broadcast %27 : vector<1x32xf32> to vector<128x32xf32>
    %31 = arith.addf %29, %30 : vector<128x32xf32>
    %cst_14 = arith.constant 0.000000e+00 : f32
    %32 = vector.broadcast %cst_14 : f32 to vector<128x32xf32>
    %33 = arith.maximumf %31, %32 : vector<128x32xf32>
    %c0_15 = arith.constant 0 : index
    %c0_16 = arith.constant 0 : index
    %34 = vector.load %arg8[%c0_15, %c0_16] : memref<32x32xbf16, #tpu.memory_space<vmem>>, vector<32x32xbf16>
    %c0_17 = arith.constant 0 : index
    %c0_18 = arith.constant 0 : index
    %35 = vector.load %arg9[%c0_17, %c0_18] : memref<1x32xf32, #tpu.memory_space<vmem>>, vector<1x32xf32>
    %36 = arith.truncf %33 : vector<128x32xf32> to vector<128x32xbf16>
    %cst_19 = arith.constant dense<0.000000e+00> : vector<128x32xf32>
    %37 = tpu.matmul %36, %34, %cst_19 {dimension_numbers = #tpu.dot_dimension_numbers<[1], [0], [0], [1], [0, 0, 1, 1], [], []>} : vector<128x32xbf16>, vector<32x32xbf16>, vector<128x32xf32> -> vector<128x32xf32>
    %38 = vector.broadcast %35 : vector<1x32xf32> to vector<128x32xf32>
    %39 = arith.addf %37, %38 : vector<128x32xf32>
    %40 = tpu.transpose %39, [1, 0] : vector<128x32xf32> -> vector<32x128xf32>
    %c0_20 = arith.constant 0 : index
    %c0_21 = arith.constant 0 : index
    %c0_22 = arith.constant 0 : index
    %41 = vector.load %arg10[%c0_20, %c0_21, %c0_22] : memref<1x32x128xf32, #tpu.memory_space<vmem>>, vector<1x32x128xf32>
    %42 = vector.shape_cast %41 : vector<1x32x128xf32> to vector<32x128xf32>
    %43 = vector.shape_cast %40 : vector<32x128xf32> to vector<1x32x128xf32>
    tpu.vector_store %arg10[%c0_20, %c0_21, %c0_22], %43 {strides = array<i32>} : memref<1x32x128xf32, #tpu.memory_space<vmem>>, vector<1x32x128xf32>,
    return
  }
  func.func @transform_0(%arg0: i32, %arg1: i32) -> (i32, i32, i32) {
    %c0_i32 = arith.constant 0 : i32
    %c0_i32_0 = arith.constant 0 : i32
    return %arg0, %arg1, %c0_i32 : i32, i32, i32
  }
  func.func @transform_1(%arg0: i32, %arg1: i32) -> (i32, i32, i32) {
    %c0_i32 = arith.constant 0 : i32
    %c0_i32_0 = arith.constant 0 : i32
    return %arg0, %arg1, %c0_i32 : i32, i32, i32
  }
  func.func @transform_2(%arg0: i32, %arg1: i32) -> (i32, i32) {
    %c0_i32 = arith.constant 0 : i32
    %c0_i32_0 = arith.constant 0 : i32
    %c0_i32_1 = arith.constant 0 : i32
    return %c0_i32, %c0_i32_0 : i32, i32
  }
  func.func @transform_3(%arg0: i32, %arg1: i32) -> (i32, i32) {
    %c0_i32 = arith.constant 0 : i32
    %c0_i32_0 = arith.constant 0 : i32
    %c0_i32_1 = arith.constant 0 : i32
    return %c0_i32, %c0_i32_0 : i32, i32
  }
  func.func @transform_4(%arg0: i32, %arg1: i32) -> (i32, i32) {
    %c0_i32 = arith.constant 0 : i32
    %c0_i32_0 = arith.constant 0 : i32
    %c0_i32_1 = arith.constant 0 : i32
    return %c0_i32, %c0_i32_0 : i32, i32
  }
  func.func @transform_5(%arg0: i32, %arg1: i32) -> (i32, i32) {
    %c0_i32 = arith.constant 0 : i32
    %c0_i32_0 = arith.constant 0 : i32
    %c0_i32_1 = arith.constant 0 : i32
    return %c0_i32, %c0_i32_0 : i32, i32
  }
  func.func @transform_6(%arg0: i32, %arg1: i32) -> (i32, i32) {
    %c0_i32 = arith.constant 0 : i32
    %c0_i32_0 = arith.constant 0 : i32
    %c0_i32_1 = arith.constant 0 : i32
    return %c0_i32, %c0_i32_0 : i32, i32
  }
  func.func @transform_7(%arg0: i32, %arg1: i32) -> (i32, i32) {
    %c0_i32 = arith.constant 0 : i32
    %c0_i32_0 = arith.constant 0 : i32
    %c0_i32_1 = arith.constant 0 : i32
    return %c0_i32, %c0_i32_0 : i32, i32
  }
  func.func @transform_8(%arg0: i32, %arg1: i32) -> (i32, i32, i32) {
    %c0_i32 = arith.constant 0 : i32
    %c0_i32_0 = arith.constant 0 : i32
    return %arg0, %c0_i32, %arg1 : i32, i32, i32
  }
}

</mosaic_0001>

<llo_original>
// kernel: tpu_custom_call.1
$region0: #{tpu_custom_call.1}
  #allocation0 [shape = 'u32[]', space=smem, size = 0x4, offset = 0x4, fixed_abs, tag = 'smem constant byte address 0x4 - core index']
  #allocation1 [shape = 'u32[144,128]{1,0:T(1,128)}', space=vmem, size = 0x12000, scoped, tag = 'internal scratch']
  %s0 = inlined_call_operand.vmem [shape: f32[2,128,2], index: 0, kind: input, shape index: {}]
  %s1 = inlined_call_operand.vmem [shape: f32[2,128,1], index: 1, kind: input, shape index: {}]
  %s2 = inlined_call_operand.vmem [shape: f32[3,16], index: 2, kind: input, shape index: {}]
  %s3 = inlined_call_operand.vmem [shape: f32[1,16], index: 3, kind: input, shape index: {}]
  %s4 = inlined_call_operand.vmem [shape: bf16[16,32], index: 4, kind: input, shape index: {}]
  %s5 = inlined_call_operand.vmem [shape: f32[1,32], index: 5, kind: input, shape index: {}]
  %s6 = inlined_call_operand.vmem [shape: bf16[32,32], index: 6, kind: input, shape index: {}]
  %s7 = inlined_call_operand.vmem [shape: f32[1,32], index: 7, kind: input, shape index: {}]
  %s8 = inlined_call_operand.hbm [shape: f32[2,32,128], index: 8, kind: output, shape index: {}]
  %s9 = sld [smem:[#allocation0]]
  $region65: #{tpu_custom_call.1} parent=0
    _
  %s11 = ssub.s32 1, %s9
  %s12 = scalar_select 0, %s11, %s9
  $region1: #{tpu_custom_call.1} parent=0
    #allocation2 [shape = 'u8[32768]{0}', space=vmem, size = 0x8000, scoped, tag = 'output window, operand 0']
    #allocation3 [shape = 's32[2]{0}', space=sflag, size = 0x8, scoped, tag = 'scoped memory for tpu_custom_call.1']
    %13 = vsyncpa [#allocation3], 0
    %s14 = scalar_lea.sflag [#allocation3], 1
    %15 = vsyncpa %s14, 0
    loop: start=0, step=1, limit=4
    $region2: #{tpu_custom_call.1} parent=1 // loop_pre_header
      _
    $region3: #{tpu_custom_call.1} parent=1 // loop_header
      %s17 = sphi 0, %s21
      %p18 = scmp.ge.s32.totalorder %s17, 4
      %s24 = sphi 0, %s36
      %s25 = sphi 0, %s32
      %s26 = sphi 0, %s24
      %s27 = sphi 0, %s25
      %s28 = sphi 0, %s26
      %s29 = sphi 0, %s27
      %s41 = sphi 0, %s43
      %s44 = sphi 0, %s41
      %s45 = sphi 0, %s44
      %s61 = sphi 0, %s45
      %s69 = sphi 0, %s71
      %s72 = sphi 0, %s69
      %s73 = sphi 0, %s72
      %s89 = sphi 0, %s73
      %s93 = sphi 0, %s93
      %s95 = sphi 0, %s93
      %s96 = sphi 0, %s95
      %s110 = sphi 0, %s96
      %s114 = sphi 0, %s114
      %s116 = sphi 0, %s114
      %s117 = sphi 0, %s116
      %s131 = sphi 0, %s117
      %s135 = sphi 0, %s135
      %s137 = sphi 0, %s135
      %s138 = sphi 0, %s137
      %s152 = sphi 0, %s138
      %s156 = sphi 0, %s156
      %s158 = sphi 0, %s156
      %s159 = sphi 0, %s158
      %s173 = sphi 0, %s159
      %s177 = sphi 0, %s177
      %s179 = sphi 0, %s177
      %s180 = sphi 0, %s179
      %s194 = sphi 0, %s180
      %s198 = sphi 0, %s198
      %s200 = sphi 0, %s198
      %s201 = sphi 0, %s200
      %s215 = sphi 0, %s201
      %s223 = sphi 0, %s225
      %s226 = sphi 0, %s223
      %s227 = sphi 0, %s226
      %s243 = sphi 0, %s227
    $region4: #{tpu_custom_call.1} parent=1 // loop_header_branch
      %20 = sbr.rel (%p18) target = $region8
    $region5: #{tpu_custom_call.1} parent=1 // loop_body
      %s22 = ssub.s32 %s17, 1
      %s23 = ssub.s32 %s17, 2
      %s30 = sadd.s32 1, %s25
      %p31 = scmp.ge.s32.totalorder %s30, 1
      %s32 = scalar_select %p31, 0, %s30
      %s33 = sadd.s32 1, %s24
      %s34 = scalar_select %p31, %s33, %s24
      %p35 = scmp.ge.s32.totalorder %s34, 2
      %s36 = scalar_select %p35, 0, %s34
      %s37 = ssub.s32 %s24, %s36
      %s38 = ssub.s32 %s25, %s32
      %s39 = sor.u32 %s37, %s38
      %p40 = scmp.eq.s32.totalorder %s39, 0
      %s42 = sadd.s32 %s41, 1
      %s43 = scalar_select %p40, %s41, %s42
      %p46 = pneg %p40
      %p47 = scmp.eq.s32.totalorder %s17, 1
      %p48 = por %p46, %p47
      %p49 = scmp.ne.s32.totalorder %s41, %s44
      %p50 = scmp.eq.s32.totalorder %s17, 0
      %p51 = por %p49, %p50
      %p52 = scmp.ne.s32.totalorder %s41, %s44
      %p53 = scmp.eq.s32.totalorder %s22, 1
      %p54 = por %p52, %p53
      %p55 = scmp.ne.s32.totalorder %s44, %s45
      %p56 = scmp.eq.s32.totalorder %s22, 0
      %p57 = por %p55, %p56
      %p58 = scmp.ne.s32.totalorder %s44, %s45
      %p59 = scmp.eq.s32.totalorder %s23, 1
      %p60 = por %p58, %p59
      %p62 = scmp.ne.s32.totalorder %s45, %s61
      %p63 = scmp.eq.s32.totalorder %s23, 0
      %p64 = por %p62, %p63
      %s65 = ssub.s32 %s24, %s36
      %s66 = ssub.s32 %s25, %s32
      %s67 = sor.u32 %s65, %s66
      %p68 = scmp.eq.s32.totalorder %s67, 0
      %s70 = sadd.s32 %s69, 1
      %s71 = scalar_select %p68, %s69, %s70
      %p74 = pneg %p68
      %p75 = scmp.eq.s32.totalorder %s17, 1
      %p76 = por %p74, %p75
      %p77 = scmp.ne.s32.totalorder %s69, %s72
      %p78 = scmp.eq.s32.totalorder %s17, 0
      %p79 = por %p77, %p78
      %p80 = scmp.ne.s32.totalorder %s69, %s72
      %p81 = scmp.eq.s32.totalorder %s22, 1
      %p82 = por %p80, %p81
      %p83 = scmp.ne.s32.totalorder %s72, %s73
      %p84 = scmp.eq.s32.totalorder %s22, 0
      %p85 = por %p83, %p84
      %p86 = scmp.ne.s32.totalorder %s72, %s73
      %p87 = scmp.eq.s32.totalorder %s23, 1
      %p88 = por %p86, %p87
      %p90 = scmp.ne.s32.totalorder %s73, %s89
      %p91 = scmp.eq.s32.totalorder %s23, 0
      %p92 = por %p90, %p91
      %s94 = sadd.s32 %s93, 1
      %p97 = scmp.eq.s32.totalorder %s17, 1
      %p98 = scmp.ne.s32.totalorder %s93, %s95
      %p99 = scmp.eq.s32.totalorder %s17, 0
      %p100 = por %p98, %p99
      %p101 = scmp.ne.s32.totalorder %s93, %s95
      %p102 = scmp.eq.s32.totalorder %s22, 1
      %p103 = por %p101, %p102
      %p104 = scmp.ne.s32.totalorder %s95, %s96
      %p105 = scmp.eq.s32.totalorder %s22, 0
      %p106 = por %p104, %p105
      %p107 = scmp.ne.s32.totalorder %s95, %s96
      %p108 = scmp.eq.s32.totalorder %s23, 1
      %p109 = por %p107, %p108
      %p111 = scmp.ne.s32.totalorder %s96, %s110
      %p112 = scmp.eq.s32.totalorder %s23, 0
      %p113 = por %p111, %p112
      %s115 = sadd.s32 %s114, 1
      %p118 = scmp.eq.s32.totalorder %s17, 1
      %p119 = scmp.ne.s32.totalorder %s114, %s116
      %p120 = scmp.eq.s32.totalorder %s17, 0
      %p121 = por %p119, %p120
      %p122 = scmp.ne.s32.totalorder %s114, %s116
      %p123 = scmp.eq.s32.totalorder %s22, 1
      %p124 = por %p122, %p123
      %p125 = scmp.ne.s32.totalorder %s116, %s117
      %p126 = scmp.eq.s32.totalorder %s22, 0
      %p127 = por %p125, %p126
      %p128 = scmp.ne.s32.totalorder %s116, %s117
      %p129 = scmp.eq.s32.totalorder %s23, 1
      %p130 = por %p128, %p129
      %p132 = scmp.ne.s32.totalorder %s117, %s131
      %p133 = scmp.eq.s32.totalorder %s23, 0
      %p134 = por %p132, %p133
      %s136 = sadd.s32 %s135, 1
      %p139 = scmp.eq.s32.totalorder %s17, 1
      %p140 = scmp.ne.s32.totalorder %s135, %s137
      %p141 = scmp.eq.s32.totalorder %s17, 0
      %p142 = por %p140, %p141
      %p143 = scmp.ne.s32.totalorder %s135, %s137
      %p144 = scmp.eq.s32.totalorder %s22, 1
      %p145 = por %p143, %p144
      %p146 = scmp.ne.s32.totalorder %s137, %s138
      %p147 = scmp.eq.s32.totalorder %s22, 0
      %p148 = por %p146, %p147
      %p149 = scmp.ne.s32.totalorder %s137, %s138
      %p150 = scmp.eq.s32.totalorder %s23, 1
      %p151 = por %p149, %p150
      %p153 = scmp.ne.s32.totalorder %s138, %s152
      %p154 = scmp.eq.s32.totalorder %s23, 0
      %p155 = por %p153, %p154
      %s157 = sadd.s32 %s156, 1
      %p160 = scmp.eq.s32.totalorder %s17, 1
      %p161 = scmp.ne.s32.totalorder %s156, %s158
      %p162 = scmp.eq.s32.totalorder %s17, 0
      %p163 = por %p161, %p162
      %p164 = scmp.ne.s32.totalorder %s156, %s158
      %p165 = scmp.eq.s32.totalorder %s22, 1
      %p166 = por %p164, %p165
      %p167 = scmp.ne.s32.totalorder %s158, %s159
      %p168 = scmp.eq.s32.totalorder %s22, 0
      %p169 = por %p167, %p168
      %p170 = scmp.ne.s32.totalorder %s158, %s159
      %p171 = scmp.eq.s32.totalorder %s23, 1
      %p172 = por %p170, %p171
      %p174 = scmp.ne.s32.totalorder %s159, %s173
      %p175 = scmp.eq.s32.totalorder %s23, 0
      %p176 = por %p174, %p175
      %s178 = sadd.s32 %s177, 1
      %p181 = scmp.eq.s32.totalorder %s17, 1
      %p182 = scmp.ne.s32.totalorder %s177, %s179
      %p183 = scmp.eq.s32.totalorder %s17, 0
      %p184 = por %p182, %p183
      %p185 = scmp.ne.s32.totalorder %s177, %s179
      %p186 = scmp.eq.s32.totalorder %s22, 1
      %p187 = por %p185, %p186
      %p188 = scmp.ne.s32.totalorder %s179, %s180
      %p189 = scmp.eq.s32.totalorder %s22, 0
      %p190 = por %p188, %p189
      %p191 = scmp.ne.s32.totalorder %s179, %s180
      %p192 = scmp.eq.s32.totalorder %s23, 1
      %p193 = por %p191, %p192
      %p195 = scmp.ne.s32.totalorder %s180, %s194
      %p196 = scmp.eq.s32.totalorder %s23, 0
      %p197 = por %p195, %p196
      %s199 = sadd.s32 %s198, 1
      %p202 = scmp.eq.s32.totalorder %s17, 1
      %p203 = scmp.ne.s32.totalorder %s198, %s200
      %p204 = scmp.eq.s32.totalorder %s17, 0
      %p205 = por %p203, %p204
      %p206 = scmp.ne.s32.totalorder %s198, %s200
      %p207 = scmp.eq.s32.totalorder %s22, 1
      %p208 = por %p206, %p207
      %p209 = scmp.ne.s32.totalorder %s200, %s201
      %p210 = scmp.eq.s32.totalorder %s22, 0
      %p211 = por %p209, %p210
      %p212 = scmp.ne.s32.totalorder %s200, %s201
      %p213 = scmp.eq.s32.totalorder %s23, 1
      %p214 = por %p212, %p213
      %p216 = scmp.ne.s32.totalorder %s201, %s215
      %p217 = scmp.eq.s32.totalorder %s23, 0
      %p218 = por %p216, %p217
      %s219 = ssub.s32 %s24, %s36
      %s220 = ssub.s32 %s25, %s32
      %s221 = sor.u32 %s219, %s220
      %p222 = scmp.eq.s32.totalorder %s221, 0
      %s224 = sadd.s32 %s223, 1
      %s225 = scalar_select %p222, %s223, %s224
      %p228 = pneg %p222
      %p229 = scmp.eq.s32.totalorder %s17, 1
      %p230 = por %p228, %p229
      %p231 = scmp.ne.s32.totalorder %s223, %s226
      %p232 = scmp.eq.s32.totalorder %s17, 0
      %p233 = por %p231, %p232
      %p234 = scmp.ne.s32.totalorder %s223, %s226
      %p235 = scmp.eq.s32.totalorder %s22, 1
      %p236 = por %p234, %p235
      %p237 = scmp.ne.s32.totalorder %s226, %s227
      %p238 = scmp.eq.s32.totalorder %s22, 0
      %p239 = por %p237, %p238
      %p240 = scmp.ne.s32.totalorder %s226, %s227
      %p241 = scmp.eq.s32.totalorder %s23, 1
      %p242 = por %p240, %p241
      %p244 = scmp.ne.s32.totalorder %s227, %s243
      %p245 = scmp.eq.s32.totalorder %s23, 0
      %p246 = por %p244, %p245
      %p247 = scmp.le.s32.totalorder 1, %s17
      %p248 = scmp.lt.s32.totalorder %s17, 3
      %p249 = pnand %p247, %p248
      %p250 = pneg %p249
      // Predicated region
      $region9: #{tpu_custom_call.1} parent=5 // pred_check
        _
      $region10: #{tpu_custom_call.1} parent=5 // pred_check_branch
        %252 = sbr.rel (%p249) target = $region12
      $region11: #{tpu_custom_call.1} parent=5 // pred_region
        %s253 = ssub.s32 %s17, 1
        // Predicated region
        $region13: #{tpu_custom_call.1} parent=11 // pred_check
          %p254 = pneg %p106
        $region14: #{tpu_custom_call.1} parent=11 // pred_check_branch
          %256 = sbr.rel (%p254) target = $region16
        $region15: #{tpu_custom_call.1} parent=11 // pred_region
          _
        $region16: #{tpu_custom_call.1} parent=11 // pred_fallthru
          _
        // Predicated region
        $region17: #{tpu_custom_call.1} parent=11 // pred_check
          %p257 = pneg %p127
        $region18: #{tpu_custom_call.1} parent=11 // pred_check_branch
          %259 = sbr.rel (%p257) target = $region20
        $region19: #{tpu_custom_call.1} parent=11 // pred_region
          _
        $region20: #{tpu_custom_call.1} parent=11 // pred_fallthru
          _
        // Predicated region
        $region21: #{tpu_custom_call.1} parent=11 // pred_check
          %p260 = pneg %p148
        $region22: #{tpu_custom_call.1} parent=11 // pred_check_branch
          %262 = sbr.rel (%p260) target = $region24
        $region23: #{tpu_custom_call.1} parent=11 // pred_region
          _
        $region24: #{tpu_custom_call.1} parent=11 // pred_fallthru
          _
        // Predicated region
        $region25: #{tpu_custom_call.1} parent=11 // pred_check
          %p263 = pneg %p169
        $region26: #{tpu_custom_call.1} parent=11 // pred_check_branch
          %265 = sbr.rel (%p263) target = $region28
        $region27: #{tpu_custom_call.1} parent=11 // pred_region
          _
        $region28: #{tpu_custom_call.1} parent=11 // pred_fallthru
          _
        // Predicated region
        $region29: #{tpu_custom_call.1} parent=11 // pred_check
          %p266 = pneg %p190
        $region30: #{tpu_custom_call.1} parent=11 // pred_check_branch
          %268 = sbr.rel (%p266) target = $region32
        $region31: #{tpu_custom_call.1} parent=11 // pred_region
          _
        $region32: #{tpu_custom_call.1} parent=11 // pred_fallthru
          _
        // Predicated region
        $region33: #{tpu_custom_call.1} parent=11 // pred_check
          %p269 = pneg %p211
        $region34: #{tpu_custom_call.1} parent=11 // pred_check_branch
          %271 = sbr.rel (%p269) target = $region36
        $region35: #{tpu_custom_call.1} parent=11 // pred_region
          _
        $region36: #{tpu_custom_call.1} parent=11 // pred_fallthru
          _
      $region12: #{tpu_custom_call.1} parent=5 // pred_fallthru
        _
      %p272 = scmp.lt.s32.totalorder %s17, 2
      // Predicated region
      $region37: #{tpu_custom_call.1} parent=5 // pred_check
        %p273 = pneg %p272
      $region38: #{tpu_custom_call.1} parent=5 // pred_check_branch
        %275 = sbr.rel (%p273) target = $region40
      $region39: #{tpu_custom_call.1} parent=5 // pred_region
        // Predicated region
        $region41: #{tpu_custom_call.1} parent=39 // pred_check
          %p276 = pneg %p51
        $region42: #{tpu_custom_call.1} parent=39 // pred_check_branch
          %278 = sbr.rel (%p276) target = $region44
        $region43: #{tpu_custom_call.1} parent=39 // pred_region
          %s279 = smul.u32 16, %s25
          %p280 = scmp.lt.s32.totalorder %s24, 1
          %s281 = scalar_select %p280, %s24, 1
          %p282 = scmp.lt.s32.totalorder %s279, 15
          %s283 = scalar_select %p282, %s279, 15
          %s284 = smul.addr %s281, 16
          %s285 = sadd.s32 %s283, %s284
          %s286 = smul.addr %s285, 8
          %s287 = scalar_lea.vmem %s0, %s286
          %s288 = smul.u32 16, %s25
        $region44: #{tpu_custom_call.1} parent=39 // pred_fallthru
          _
        // Predicated region
        $region45: #{tpu_custom_call.1} parent=39 // pred_check
          %p289 = pneg %p79
        $region46: #{tpu_custom_call.1} parent=39 // pred_check_branch
          %291 = sbr.rel (%p289) target = $region48
        $region47: #{tpu_custom_call.1} parent=39 // pred_region
          %s292 = smul.u32 16, %s25
          %p293 = scmp.lt.s32.totalorder %s24, 1
          %s294 = scalar_select %p293, %s24, 1
          %p295 = scmp.lt.s32.totalorder %s292, 15
          %s296 = scalar_select %p295, %s292, 15
          %s297 = smul.addr %s294, 16
          %s298 = sadd.s32 %s296, %s297
          %s299 = smul.addr %s298, 8
          %s300 = scalar_lea.vmem %s1, %s299
          %s301 = smul.u32 16, %s25
        $region48: #{tpu_custom_call.1} parent=39 // pred_fallthru
          _
      $region40: #{tpu_custom_call.1} parent=5 // pred_fallthru
        _
      %p302 = scmp.le.s32.totalorder 1, %s17
      %p303 = scmp.lt.s32.totalorder %s17, 3
      %p304 = pnand %p302, %p303
      %p305 = pneg %p304
      // Predicated region
      $region49: #{tpu_custom_call.1} parent=5 // pred_check
        _
      $region50: #{tpu_custom_call.1} parent=5 // pred_check_branch
        %307 = sbr.rel (%p304) target = $region52
      $region51: #{tpu_custom_call.1} parent=5 // pred_region
        %s308 = ssub.s32 %s17, 1
        %s309 = smul.u32 16, %s27
        %p310 = scmp.lt.s32.totalorder %s26, 1
        %s311 = scalar_select %p310, %s26, 1
        %p312 = scmp.lt.s32.totalorder %s309, 15
        %s313 = scalar_select %p312, %s309, 15
        %s314 = smul.addr %s311, 16
        %s315 = sadd.s32 %s313, %s314
        %s316 = smul.addr %s315, 8
        %s317 = scalar_lea.vmem %s0, %s316
        %p318 = pneg %p57
        %p319 = pneg %p54
        %s320 = smul.u32 16, %s27
        %p321 = scmp.lt.s32.totalorder %s26, 1
        %s322 = scalar_select %p321, %s26, 1
        %p323 = scmp.lt.s32.totalorder %s320, 15
        %s324 = scalar_select %p323, %s320, 15
        %s325 = smul.addr %s322, 16
        %s326 = sadd.s32 %s324, %s325
        %s327 = smul.addr %s326, 8
        %s328 = scalar_lea.vmem %s1, %s327
        %p329 = pneg %p85
        %p330 = pneg %p82
        %p331 = pneg %p106
        %p332 = pneg %p103
        %p333 = pneg %p127
        %p334 = pneg %p124
        %p335 = pneg %p148
        %p336 = pneg %p145
        %p337 = pneg %p169
        %p338 = pneg %p166
        %p339 = pneg %p190
        %p340 = pneg %p187
        %p341 = pneg %p211
        %p342 = pneg %p208
        %p343 = pneg %p239
        %p344 = pneg %p236
        %s345 = sand.u32 %s226, 1
        %s346 = scalar_lea.sflag [#allocation3], %s345
        %s347 = sand.u32 %s226, 1
        %s348 = smul.addr %s347, 32
        %s349 = scalar_lea.vmem [#allocation2], %s348
        %s350 = smul.u32 16, %s27
        %p351 = scmp.lt.s32.totalorder %s26, 1
        %s352 = scalar_select %p351, %s26, 1
        %p353 = scmp.lt.s32.totalorder %s350, 15
        %s354 = scalar_select %p353, %s350, 15
        %s355 = smul.addr %s352, 16
        %s356 = sadd.s32 %s354, %s355
        %s357 = smul.addr %s356, 8
        %s358 = scalar_lea.vmem %s0, %s357
        %s359 = smul.u32 16, %s27
        %s360 = smul.u32 16, %s27
        %p361 = scmp.lt.s32.totalorder %s26, 1
        %s362 = scalar_select %p361, %s26, 1
        %p363 = scmp.lt.s32.totalorder %s360, 15
        %s364 = scalar_select %p363, %s360, 15
        %s365 = smul.addr %s362, 16
        %s366 = sadd.s32 %s364, %s365
        %s367 = smul.addr %s366, 8
        %s368 = scalar_lea.vmem %s1, %s367
        %s369 = smul.u32 16, %s27
        %v371 = vld [vmem:[%s358] sm:$0xff]
        %v372 = vld [vmem:[%s358 + $0x8] sm:$0xff]
        %v373 = vld [vmem:[%s358 + $0x10] sm:$0xff]
        %v374 = vld [vmem:[%s358 + $0x18] sm:$0xff]
        %v375 = vld [vmem:[%s358 + $0x20] sm:$0xff]
        %v376 = vld [vmem:[%s358 + $0x28] sm:$0xff]
        %v377 = vld [vmem:[%s358 + $0x30] sm:$0xff]
        %v378 = vld [vmem:[%s358 + $0x38] sm:$0xff]
        %v379 = vld [vmem:[%s358 + $0x40] sm:$0xff]
        %v380 = vld [vmem:[%s358 + $0x48] sm:$0xff]
        %v381 = vld [vmem:[%s358 + $0x50] sm:$0xff]
        %v382 = vld [vmem:[%s358 + $0x58] sm:$0xff]
        %v383 = vld [vmem:[%s358 + $0x60] sm:$0xff]
        %v384 = vld [vmem:[%s358 + $0x68] sm:$0xff]
        %v385 = vld [vmem:[%s358 + $0x70] sm:$0xff]
        %v386 = vld [vmem:[%s358 + $0x78] sm:$0xff]
        %v387 = vld [vmem:[%s368] sm:$0xff]
        %v388 = vld [vmem:[%s368 + $0x8] sm:$0xff]
        %v389 = vld [vmem:[%s368 + $0x10] sm:$0xff]
        %v390 = vld [vmem:[%s368 + $0x18] sm:$0xff]
        %v391 = vld [vmem:[%s368 + $0x20] sm:$0xff]
        %v392 = vld [vmem:[%s368 + $0x28] sm:$0xff]
        %v393 = vld [vmem:[%s368 + $0x30] sm:$0xff]
        %v394 = vld [vmem:[%s368 + $0x38] sm:$0xff]
        %v395 = vld [vmem:[%s368 + $0x40] sm:$0xff]
        %v396 = vld [vmem:[%s368 + $0x48] sm:$0xff]
        %v397 = vld [vmem:[%s368 + $0x50] sm:$0xff]
        %v398 = vld [vmem:[%s368 + $0x58] sm:$0xff]
        %v399 = vld [vmem:[%s368 + $0x60] sm:$0xff]
        %v400 = vld [vmem:[%s368 + $0x68] sm:$0xff]
        %v401 = vld [vmem:[%s368 + $0x70] sm:$0xff]
        %v402 = vld [vmem:[%s368 + $0x78] sm:$0xff]
        %v403 = vld [vmem:[%s2] sm:$0x7]
        %v404 = vld [vmem:[%s3] sm:$0x1]
        %406 = vset.pattern.permute.xlu0 0
        %407 = vperm.xlu0 %406, %v371
        %v408 = vpop.permute.xlu0 %407
        %411 = vset.pattern.permute.xlu0 0
        %412 = vperm.xlu0 %411, %v372
        %v413 = vpop.permute.xlu0 %412
        %416 = vset.pattern.permute.xlu0 0
        %417 = vperm.xlu0 %416, %v373
        %v418 = vpop.permute.xlu0 %417
        %421 = vset.pattern.permute.xlu0 0
        %422 = vperm.xlu0 %421, %v374
        %v423 = vpop.permute.xlu0 %422
        %426 = vset.pattern.permute.xlu0 0
        %427 = vperm.xlu0 %426, %v375
        %v428 = vpop.permute.xlu0 %427
        %431 = vset.pattern.permute.xlu0 0
        %432 = vperm.xlu0 %431, %v376
        %v433 = vpop.permute.xlu0 %432
        %436 = vset.pattern.permute.xlu0 0
        %437 = vperm.xlu0 %436, %v377
        %v438 = vpop.permute.xlu0 %437
        %441 = vset.pattern.permute.xlu0 0
        %442 = vperm.xlu0 %441, %v378
        %v443 = vpop.permute.xlu0 %442
        %446 = vset.pattern.permute.xlu0 0
        %447 = vperm.xlu0 %446, %v379
        %v448 = vpop.permute.xlu0 %447
        %451 = vset.pattern.permute.xlu0 0
        %452 = vperm.xlu0 %451, %v380
        %v453 = vpop.permute.xlu0 %452
        %456 = vset.pattern.permute.xlu0 0
        %457 = vperm.xlu0 %456, %v381
        %v458 = vpop.permute.xlu0 %457
        %461 = vset.pattern.permute.xlu0 0
        %462 = vperm.xlu0 %461, %v382
        %v463 = vpop.permute.xlu0 %462
        %466 = vset.pattern.permute.xlu0 0
        %467 = vperm.xlu0 %466, %v383
        %v468 = vpop.permute.xlu0 %467
        %471 = vset.pattern.permute.xlu0 0
        %472 = vperm.xlu0 %471, %v384
        %v473 = vpop.permute.xlu0 %472
        %476 = vset.pattern.permute.xlu0 0
        %477 = vperm.xlu0 %476, %v385
        %v478 = vpop.permute.xlu0 %477
        %481 = vset.pattern.permute.xlu0 0
        %482 = vperm.xlu0 %481, %v386
        %v483 = vpop.permute.xlu0 %482
        %v485 = vlaneseq
        %v486 = vshrl.u32 %v485, 7
        %v487 = vsub.s32 0, %v486
        %v488 = vrot.slane %v403, %v487
        %v489 = vmul.f32 %v408, %v488
        %v490 = vmul.f32 %v413, %v488
        %v491 = vmul.f32 %v418, %v488
        %v492 = vmul.f32 %v423, %v488
        %v493 = vmul.f32 %v428, %v488
        %v494 = vmul.f32 %v433, %v488
        %v495 = vmul.f32 %v438, %v488
        %v496 = vmul.f32 %v443, %v488
        %v497 = vmul.f32 %v448, %v488
        %v498 = vmul.f32 %v453, %v488
        %v499 = vmul.f32 %v458, %v488
        %v500 = vmul.f32 %v463, %v488
        %v501 = vmul.f32 %v468, %v488
        %v502 = vmul.f32 %v473, %v488
        %v503 = vmul.f32 %v478, %v488
        %v504 = vmul.f32 %v483, %v488
        %505 = vset.pattern.permute.xlu0 1
        %506 = vperm.xlu0 %505, %v371
        %v507 = vpop.permute.xlu0 %506
        %509 = vset.pattern.permute.xlu0 1
        %510 = vperm.xlu0 %509, %v372
        %v511 = vpop.permute.xlu0 %510
        %513 = vset.pattern.permute.xlu0 1
        %514 = vperm.xlu0 %513, %v373
        %v515 = vpop.permute.xlu0 %514
        %517 = vset.pattern.permute.xlu0 1
        %518 = vperm.xlu0 %517, %v374
        %v519 = vpop.permute.xlu0 %518
        %521 = vset.pattern.permute.xlu0 1
        %522 = vperm.xlu0 %521, %v375
        %v523 = vpop.permute.xlu0 %522
        %525 = vset.pattern.permute.xlu0 1
        %526 = vperm.xlu0 %525, %v376
        %v527 = vpop.permute.xlu0 %526
        %529 = vset.pattern.permute.xlu0 1
        %530 = vperm.xlu0 %529, %v377
        %v531 = vpop.permute.xlu0 %530
        %533 = vset.pattern.permute.xlu0 1
        %534 = vperm.xlu0 %533, %v378
        %v535 = vpop.permute.xlu0 %534
        %537 = vset.pattern.permute.xlu0 1
        %538 = vperm.xlu0 %537, %v379
        %v539 = vpop.permute.xlu0 %538
        %541 = vset.pattern.permute.xlu0 1
        %542 = vperm.xlu0 %541, %v380
        %v543 = vpop.permute.xlu0 %542
        %545 = vset.pattern.permute.xlu0 1
        %546 = vperm.xlu0 %545, %v381
        %v547 = vpop.permute.xlu0 %546
        %549 = vset.pattern.permute.xlu0 1
        %550 = vperm.xlu0 %549, %v382
        %v551 = vpop.permute.xlu0 %550
        %553 = vset.pattern.permute.xlu0 1
        %554 = vperm.xlu0 %553, %v383
        %v555 = vpop.permute.xlu0 %554
        %557 = vset.pattern.permute.xlu0 1
        %558 = vperm.xlu0 %557, %v384
        %v559 = vpop.permute.xlu0 %558
        %561 = vset.pattern.permute.xlu0 1
        %562 = vperm.xlu0 %561, %v385
        %v563 = vpop.permute.xlu0 %562
        %565 = vset.pattern.permute.xlu0 1
        %566 = vperm.xlu0 %565, %v386
        %v567 = vpop.permute.xlu0 %566
        %v569 = vlaneseq
        %v570 = vshrl.u32 %v569, 7
        %v571 = vsub.s32 1, %v570
        %v572 = vrot.slane %v403, %v571
        %v573 = vmul.f32 %v507, %v572
        %v574 = vmul.f32 %v511, %v572
        %v575 = vmul.f32 %v515, %v572
        %v576 = vmul.f32 %v519, %v572
        %v577 = vmul.f32 %v523, %v572
        %v578 = vmul.f32 %v527, %v572
        %v579 = vmul.f32 %v531, %v572
        %v580 = vmul.f32 %v535, %v572
        %v581 = vmul.f32 %v539, %v572
        %v582 = vmul.f32 %v543, %v572
        %v583 = vmul.f32 %v547, %v572
        %v584 = vmul.f32 %v551, %v572
        %v585 = vmul.f32 %v555, %v572
        %v586 = vmul.f32 %v559, %v572
        %v587 = vmul.f32 %v563, %v572
        %v588 = vmul.f32 %v567, %v572
        %v589 = vadd.f32 %v489, %v573
        %v590 = vadd.f32 %v490, %v574
        %v591 = vadd.f32 %v491, %v575
        %v592 = vadd.f32 %v492, %v576
        %v593 = vadd.f32 %v493, %v577
        %v594 = vadd.f32 %v494, %v578
        %v595 = vadd.f32 %v495, %v579
        %v596 = vadd.f32 %v496, %v580
        %v597 = vadd.f32 %v497, %v581
        %v598 = vadd.f32 %v498, %v582
        %v599 = vadd.f32 %v499, %v583
        %v600 = vadd.f32 %v500, %v584
        %v601 = vadd.f32 %v501, %v585
        %v602 = vadd.f32 %v502, %v586
        %v603 = vadd.f32 %v503, %v587
        %v604 = vadd.f32 %v504, %v588
        %606 = vset.pattern.permute.xlu0 0
        %607 = vperm.xlu0 %606, %v387
        %v608 = vpop.permute.xlu0 %607
        %611 = vset.pattern.permute.xlu0 0
        %612 = vperm.xlu0 %611, %v388
        %v613 = vpop.permute.xlu0 %612
        %616 = vset.pattern.permute.xlu0 0
        %617 = vperm.xlu0 %616, %v389
        %v618 = vpop.permute.xlu0 %617
        %621 = vset.pattern.permute.xlu0 0
        %622 = vperm.xlu0 %621, %v390
        %v623 = vpop.permute.xlu0 %622
        %626 = vset.pattern.permute.xlu0 0
        %627 = vperm.xlu0 %626, %v391
        %v628 = vpop.permute.xlu0 %627
        %631 = vset.pattern.permute.xlu0 0
        %632 = vperm.xlu0 %631, %v392
        %v633 = vpop.permute.xlu0 %632
        %636 = vset.pattern.permute.xlu0 0
        %637 = vperm.xlu0 %636, %v393
        %v638 = vpop.permute.xlu0 %637
        %641 = vset.pattern.permute.xlu0 0
        %642 = vperm.xlu0 %641, %v394
        %v643 = vpop.permute.xlu0 %642
        %646 = vset.pattern.permute.xlu0 0
        %647 = vperm.xlu0 %646, %v395
        %v648 = vpop.permute.xlu0 %647
        %651 = vset.pattern.permute.xlu0 0
        %652 = vperm.xlu0 %651, %v396
        %v653 = vpop.permute.xlu0 %652
        %656 = vset.pattern.permute.xlu0 0
        %657 = vperm.xlu0 %656, %v397
        %v658 = vpop.permute.xlu0 %657
        %661 = vset.pattern.permute.xlu0 0
        %662 = vperm.xlu0 %661, %v398
        %v663 = vpop.permute.xlu0 %662
        %666 = vset.pattern.permute.xlu0 0
        %667 = vperm.xlu0 %666, %v399
        %v668 = vpop.permute.xlu0 %667
        %671 = vset.pattern.permute.xlu0 0
        %672 = vperm.xlu0 %671, %v400
        %v673 = vpop.permute.xlu0 %672
        %676 = vset.pattern.permute.xlu0 0
        %677 = vperm.xlu0 %676, %v401
        %v678 = vpop.permute.xlu0 %677
        %681 = vset.pattern.permute.xlu0 0
        %682 = vperm.xlu0 %681, %v402
        %v683 = vpop.permute.xlu0 %682
        %v685 = vlaneseq
        %v686 = vshrl.u32 %v685, 7
        %v687 = vsub.s32 2, %v686
        %v688 = vrot.slane %v403, %v687
        %v689 = vmul.f32 %v608, %v688
        %v690 = vmul.f32 %v613, %v688
        %v691 = vmul.f32 %v618, %v688
        %v692 = vmul.f32 %v623, %v688
        %v693 = vmul.f32 %v628, %v688
        %v694 = vmul.f32 %v633, %v688
        %v695 = vmul.f32 %v638, %v688
        %v696 = vmul.f32 %v643, %v688
        %v697 = vmul.f32 %v648, %v688
        %v698 = vmul.f32 %v653, %v688
        %v699 = vmul.f32 %v658, %v688
        %v700 = vmul.f32 %v663, %v688
        %v701 = vmul.f32 %v668, %v688
        %v702 = vmul.f32 %v673, %v688
        %v703 = vmul.f32 %v678, %v688
        %v704 = vmul.f32 %v683, %v688
        %v705 = vadd.f32 %v589, %v689
        %v706 = vadd.f32 %v590, %v690
        %v707 = vadd.f32 %v591, %v691
        %v708 = vadd.f32 %v592, %v692
        %v709 = vadd.f32 %v593, %v693
        %v710 = vadd.f32 %v594, %v694
        %v711 = vadd.f32 %v595, %v695
        %v712 = vadd.f32 %v596, %v696
        %v713 = vadd.f32 %v597, %v697
        %v714 = vadd.f32 %v598, %v698
        %v715 = vadd.f32 %v599, %v699
        %v716 = vadd.f32 %v600, %v700
        %v717 = vadd.f32 %v601, %v701
        %v718 = vadd.f32 %v602, %v702
        %v719 = vadd.f32 %v603, %v703
        %v720 = vadd.f32 %v604, %v704
        %v722 = vlaneseq
        %v723 = vshrl.u32 %v722, 7
        %v724 = vsub.s32 0, %v723
        %v725 = vrot.slane %v404, %v724
        %v727 = vadd.f32 %v705, %v725
        %v728 = vadd.f32 %v706, %v725
        %v729 = vadd.f32 %v707, %v725
        %v730 = vadd.f32 %v708, %v725
        %v731 = vadd.f32 %v709, %v725
        %v732 = vadd.f32 %v710, %v725
        %v733 = vadd.f32 %v711, %v725
        %v734 = vadd.f32 %v712, %v725
        %v735 = vadd.f32 %v713, %v725
        %v736 = vadd.f32 %v714, %v725
        %v737 = vadd.f32 %v715, %v725
        %v738 = vadd.f32 %v716, %v725
        %v739 = vadd.f32 %v717, %v725
        %v740 = vadd.f32 %v718, %v725
        %v741 = vadd.f32 %v719, %v725
        %v742 = vadd.f32 %v720, %v725
        %v743 = vmax.f32 %v727, 0.0
        %v744 = vmax.f32 %v728, 0.0
        %v745 = vmax.f32 %v729, 0.0
        %v746 = vmax.f32 %v730, 0.0
        %v747 = vmax.f32 %v731, 0.0
        %v748 = vmax.f32 %v732, 0.0
        %v749 = vmax.f32 %v733, 0.0
        %v750 = vmax.f32 %v734, 0.0
        %v751 = vmax.f32 %v735, 0.0
        %v752 = vmax.f32 %v736, 0.0
        %v753 = vmax.f32 %v737, 0.0
        %v754 = vmax.f32 %v738, 0.0
        %v755 = vmax.f32 %v739, 0.0
        %v756 = vmax.f32 %v740, 0.0
        %v757 = vmax.f32 %v741, 0.0
        %v758 = vmax.f32 %v742, 0.0
        %v759 = vld [vmem:[%s4] sm:$0xf]
        %v760 = vld [vmem:[%s4 + $0x4] sm:$0xf]
        %v761 = vld [vmem:[%s5] sm:$0x1]
        %v762 = vpack.c.bf16 %v744, %v743
        %v763 = vpack.c.bf16 %v746, %v745
        %v764 = vpack.c.bf16 %v748, %v747
        %v765 = vpack.c.bf16 %v750, %v749
        %v766 = vpack.c.bf16 %v752, %v751
        %v767 = vpack.c.bf16 %v754, %v753
        %v768 = vpack.c.bf16 %v756, %v755
        %v769 = vpack.c.bf16 %v758, %v757
        %v771 = vlaneseq
        %v772 = vshrl.u32 %v771, 7
        %v773 = vsub.s32 0, %v772
        %v774 = vrot.slane %v761, %v773
        %v778 = vunpack.c.l.b16 %v759
        %v779 = vunpack.c.l.b16 %v760
        %v780 = vpack.c.b16 %v779, %v778
        %vm782 = vcmask 130048
        %v784 = vsel %vm782, %v762, 0
        %v787 = vsel %vm782, %v763, 0
        %v790 = vsel %vm782, %v764, 0
        %v793 = vsel %vm782, %v765, 0
        %v796 = vsel %vm782, %v766, 0
        %v799 = vsel %vm782, %v767, 0
        %v802 = vsel %vm782, %v768, 0
        %v805 = vsel %vm782, %v769, 0
        %807 = vmatprep.subr.bf16.mxu0 0
        %808 = vmatpush1.bf16.msra.mxu0 %v780
        %809 = vmatprep.subr.bf16.mxu0 0
        %810 = vmatpush1.bf16.msra.mxu0 0
        %811 = vmatprep.subr.bf16.mxu0 0
        %812 = vmatpush1.bf16.msra.mxu0 0
        %813 = vmatprep.subr.bf16.mxu0 0
        %814 = vmatpush1.bf16.msra.mxu0 0
        %815 = vmatprep.subr.bf16.mxu0 0
        %816 = vmatpush1.bf16.msra.mxu0 0
        %817 = vmatprep.subr.bf16.mxu0 0
        %818 = vmatpush1.bf16.msra.mxu0 0
        %819 = vmatprep.subr.bf16.mxu0 0
        %820 = vmatpush1.bf16.msra.mxu0 0
        %821 = vmatprep.subr.bf16.mxu0 0
        %822 = vmatpush1.bf16.msra.mxu0 0
        %823 = vmatprep.subr.bf16.mxu0 0
        %824 = vmatpush1.bf16.msra.mxu0 0
        %825 = vmatprep.subr.bf16.mxu0 0
        %826 = vmatpush1.bf16.msra.mxu0 0
        %827 = vmatprep.subr.bf16.mxu0 0
        %828 = vmatpush1.bf16.msra.mxu0 0
        %829 = vmatprep.subr.bf16.mxu0 0
        %830 = vmatpush1.bf16.msra.mxu0 0
        %831 = vmatprep.subr.bf16.mxu0 0
        %832 = vmatpush1.bf16.msra.mxu0 0
        %833 = vmatprep.subr.bf16.mxu0 0
        %834 = vmatpush1.bf16.msra.mxu0 0
        %835 = vmatprep.subr.bf16.mxu0 0
        %836 = vmatpush1.bf16.msra.mxu0 0
        %837 = vmatprep.subr.bf16.mxu0 0
        %838 = vmatpush1.bf16.msra.mxu0 0
        %839 = vmatprep.mubr.bf16.mxu0 0
        %840 = vmatmul.mubr.bf16.gmra.mrb[0].mxu0 %v784
        %v841 = vpop.f32.mrb[0].mxu0
        %v842 = vadd.f32 %v774, %v841
        %v843 = vpop.f32.mrb[0].mxu0
        %v844 = vpop.f32.mrb[0].mxu0
        %v845 = vadd.f32 %v774, %v844
        %v846 = vpop.f32.mrb[0].mxu0
        %847 = vmatprep.mubr.bf16.mxu0 0
        %848 = vmatmul.mubr.bf16.gmra.mrb[0].mxu0 %v787
        %v849 = vpop.f32.mrb[0].mxu0
        %v850 = vadd.f32 %v774, %v849
        %v851 = vpop.f32.mrb[0].mxu0
        %v852 = vpop.f32.mrb[0].mxu0
        %v853 = vadd.f32 %v774, %v852
        %v854 = vpop.f32.mrb[0].mxu0
        %855 = vmatprep.mubr.bf16.mxu0 0
        %856 = vmatmul.mubr.bf16.gmra.mrb[0].mxu0 %v790
        %v857 = vpop.f32.mrb[0].mxu0
        %v858 = vadd.f32 %v774, %v857
        %v859 = vpop.f32.mrb[0].mxu0
        %v860 = vpop.f32.mrb[0].mxu0
        %v861 = vadd.f32 %v774, %v860
        %v862 = vpop.f32.mrb[0].mxu0
        %863 = vmatprep.mubr.bf16.mxu0 0
        %864 = vmatmul.mubr.bf16.gmra.mrb[0].mxu0 %v793
        %v865 = vpop.f32.mrb[0].mxu0
        %v866 = vadd.f32 %v774, %v865
        %v867 = vpop.f32.mrb[0].mxu0
        %v868 = vpop.f32.mrb[0].mxu0
        %v869 = vadd.f32 %v774, %v868
        %v870 = vpop.f32.mrb[0].mxu0
        %871 = vmatprep.mubr.bf16.mxu0 0
        %872 = vmatmul.mubr.bf16.gmra.mrb[0].mxu0 %v796
        %v873 = vpop.f32.mrb[0].mxu0
        %v874 = vadd.f32 %v774, %v873
        %v875 = vpop.f32.mrb[0].mxu0
        %v876 = vpop.f32.mrb[0].mxu0
        %v877 = vadd.f32 %v774, %v876
        %v878 = vpop.f32.mrb[0].mxu0
        %879 = vmatprep.mubr.bf16.mxu0 0
        %880 = vmatmul.mubr.bf16.gmra.mrb[0].mxu0 %v799
        %v881 = vpop.f32.mrb[0].mxu0
        %v882 = vadd.f32 %v774, %v881
        %v883 = vpop.f32.mrb[0].mxu0
        %v884 = vpop.f32.mrb[0].mxu0
        %v885 = vadd.f32 %v774, %v884
        %v886 = vpop.f32.mrb[0].mxu0
        %887 = vmatprep.mubr.bf16.mxu0 0
        %888 = vmatmul.mubr.bf16.gmra.mrb[0].mxu0 %v802
        %v889 = vpop.f32.mrb[0].mxu0
        %v890 = vadd.f32 %v774, %v889
        %v891 = vpop.f32.mrb[0].mxu0
        %v892 = vpop.f32.mrb[0].mxu0
        %v893 = vadd.f32 %v774, %v892
        %v894 = vpop.f32.mrb[0].mxu0
        %895 = vmatprep.mubr.bf16.mxu0 0
        %896 = vmatmul.mubr.bf16.gmra.mrb[0].mxu0 %v805
        %v897 = vpop.f32.mrb[0].mxu0
        %v898 = vadd.f32 %v774, %v897
        %v899 = vpop.f32.mrb[0].mxu0
        %v900 = vpop.f32.mrb[0].mxu0
        %v901 = vadd.f32 %v774, %v900
        %v902 = vpop.f32.mrb[0].mxu0
        %903 = vdwg.mxu0
        %v904 = vmax.f32 %v842, 0.0
        %v905 = vmax.f32 %v845, 0.0
        %v906 = vmax.f32 %v850, 0.0
        %v907 = vmax.f32 %v853, 0.0
        %v908 = vmax.f32 %v858, 0.0
        %v909 = vmax.f32 %v861, 0.0
        %v910 = vmax.f32 %v866, 0.0
        %v911 = vmax.f32 %v869, 0.0
        %v912 = vmax.f32 %v874, 0.0
        %v913 = vmax.f32 %v877, 0.0
        %v914 = vmax.f32 %v882, 0.0
        %v915 = vmax.f32 %v885, 0.0
        %v916 = vmax.f32 %v890, 0.0
        %v917 = vmax.f32 %v893, 0.0
        %v918 = vmax.f32 %v898, 0.0
        %v919 = vmax.f32 %v901, 0.0
        %v920 = vld [vmem:[%s6] sm:$0xf]
        %v921 = vld [vmem:[%s6 + $0x4] sm:$0xf]
        %v922 = vld [vmem:[%s6 + $0x8] sm:$0xf]
        %v923 = vld [vmem:[%s6 + $0xc] sm:$0xf]
        %v924 = vld [vmem:[%s7] sm:$0x1]
        %v925 = vpack.c.bf16 %v905, %v904
        %v926 = vpack.c.bf16 %v907, %v906
        %v927 = vpack.c.bf16 %v909, %v908
        %v928 = vpack.c.bf16 %v911, %v910
        %v929 = vpack.c.bf16 %v913, %v912
        %v930 = vpack.c.bf16 %v915, %v914
        %v931 = vpack.c.bf16 %v917, %v916
        %v932 = vpack.c.bf16 %v919, %v918
        %v934 = vlaneseq
        %v935 = vshrl.u32 %v934, 7
        %v936 = vsub.s32 0, %v935
        %v937 = vrot.slane %v924, %v936
        %v943 = vunpack.c.l.b16 %v920
        %v944 = vunpack.c.l.b16 %v921
        %v945 = vunpack.c.l.b16 %v922
        %v946 = vunpack.c.l.b16 %v923
        %v947 = vpack.c.b16 %v944, %v943
        %v948 = vpack.c.b16 %v946, %v945
        %vm951 = vcmask 261120
        %v953 = vsel %vm951, %v925, 0
        %v956 = vsel %vm951, %v926, 0
        %v959 = vsel %vm951, %v927, 0
        %v962 = vsel %vm951, %v928, 0
        %v965 = vsel %vm951, %v929, 0
        %v968 = vsel %vm951, %v930, 0
        %v971 = vsel %vm951, %v931, 0
        %v974 = vsel %vm951, %v932, 0
        %976 = vmatprep.subr.bf16.mxu0 0
        %977 = vmatpush1.bf16.msra.mxu0 %v947
        %978 = vmatprep.subr.bf16.mxu0 0
        %979 = vmatpush1.bf16.msra.mxu0 %v948
        %980 = vmatprep.subr.bf16.mxu0 0
        %981 = vmatpush1.bf16.msra.mxu0 0
        %982 = vmatprep.subr.bf16.mxu0 0
        %983 = vmatpush1.bf16.msra.mxu0 0
        %984 = vmatprep.subr.bf16.mxu0 0
        %985 = vmatpush1.bf16.msra.mxu0 0
        %986 = vmatprep.subr.bf16.mxu0 0
        %987 = vmatpush1.bf16.msra.mxu0 0
        %988 = vmatprep.subr.bf16.mxu0 0
        %989 = vmatpush1.bf16.msra.mxu0 0
        %990 = vmatprep.subr.bf16.mxu0 0
        %991 = vmatpush1.bf16.msra.mxu0 0
        %992 = vmatprep.subr.bf16.mxu0 0
        %993 = vmatpush1.bf16.msra.mxu0 0
        %994 = vmatprep.subr.bf16.mxu0 0
        %995 = vmatpush1.bf16.msra.mxu0 0
        %996 = vmatprep.subr.bf16.mxu0 0
        %997 = vmatpush1.bf16.msra.mxu0 0
        %998 = vmatprep.subr.bf16.mxu0 0
        %999 = vmatpush1.bf16.msra.mxu0 0
        %1000 = vmatprep.subr.bf16.mxu0 0
        %1001 = vmatpush1.bf16.msra.mxu0 0
        %1002 = vmatprep.subr.bf16.mxu0 0
        %1003 = vmatpush1.bf16.msra.mxu0 0
        %1004 = vmatprep.subr.bf16.mxu0 0
        %1005 = vmatpush1.bf16.msra.mxu0 0
        %1006 = vmatprep.subr.bf16.mxu0 0
        %1007 = vmatpush1.bf16.msra.mxu0 0
        %1008 = vmatprep.mubr.bf16.mxu0 0
        %1009 = vmatmul.mubr.bf16.gmra.mrb[0].mxu0 %v953
        %v1010 = vpop.f32.mrb[0].mxu0
        %v1011 = vadd.f32 %v937, %v1010
        %v1012 = vpop.f32.mrb[0].mxu0
        %v1013 = vpop.f32.mrb[0].mxu0
        %v1014 = vadd.f32 %v937, %v1013
        %v1015 = vpop.f32.mrb[0].mxu0
        %1016 = vmatprep.mubr.bf16.mxu0 0
        %1017 = vmatmul.mubr.bf16.gmra.mrb[0].mxu0 %v956
        %v1018 = vpop.f32.mrb[0].mxu0
        %v1019 = vadd.f32 %v937, %v1018
        %v1020 = vpop.f32.mrb[0].mxu0
        %v1021 = vpop.f32.mrb[0].mxu0
        %v1022 = vadd.f32 %v937, %v1021
        %v1023 = vpop.f32.mrb[0].mxu0
        %1024 = vmatprep.mubr.bf16.mxu0 0
        %1025 = vmatmul.mubr.bf16.gmra.mrb[0].mxu0 %v959
        %v1026 = vpop.f32.mrb[0].mxu0
        %v1027 = vadd.f32 %v937, %v1026
        %v1028 = vpop.f32.mrb[0].mxu0
        %v1029 = vpop.f32.mrb[0].mxu0
        %v1030 = vadd.f32 %v937, %v1029
        %v1031 = vpop.f32.mrb[0].mxu0
        %1032 = vmatprep.mubr.bf16.mxu0 0
        %1033 = vmatmul.mubr.bf16.gmra.mrb[0].mxu0 %v962
        %v1034 = vpop.f32.mrb[0].mxu0
        %v1035 = vadd.f32 %v937, %v1034
        %v1036 = vpop.f32.mrb[0].mxu0
        %v1037 = vpop.f32.mrb[0].mxu0
        %v1038 = vadd.f32 %v937, %v1037
        %v1039 = vpop.f32.mrb[0].mxu0
        %1040 = vmatprep.mubr.bf16.mxu0 0
        %1041 = vmatmul.mubr.bf16.gmra.mrb[0].mxu0 %v965
        %v1042 = vpop.f32.mrb[0].mxu0
        %v1043 = vadd.f32 %v937, %v1042
        %v1044 = vpop.f32.mrb[0].mxu0
        %v1045 = vpop.f32.mrb[0].mxu0
        %v1046 = vadd.f32 %v937, %v1045
        %v1047 = vpop.f32.mrb[0].mxu0
        %1048 = vmatprep.mubr.bf16.mxu0 0
        %1049 = vmatmul.mubr.bf16.gmra.mrb[0].mxu0 %v968
        %v1050 = vpop.f32.mrb[0].mxu0
        %v1051 = vadd.f32 %v937, %v1050
        %v1052 = vpop.f32.mrb[0].mxu0
        %v1053 = vpop.f32.mrb[0].mxu0
        %v1054 = vadd.f32 %v937, %v1053
        %v1055 = vpop.f32.mrb[0].mxu0
        %1056 = vmatprep.mubr.bf16.mxu0 0
        %1057 = vmatmul.mubr.bf16.gmra.mrb[0].mxu0 %v971
        %v1058 = vpop.f32.mrb[0].mxu0
        %v1059 = vadd.f32 %v937, %v1058
        %v1060 = vpop.f32.mrb[0].mxu0
        %v1061 = vpop.f32.mrb[0].mxu0
        %v1062 = vadd.f32 %v937, %v1061
        %v1063 = vpop.f32.mrb[0].mxu0
        %1064 = vmatprep.mubr.bf16.mxu0 0
        %1065 = vmatmul.mubr.bf16.gmra.mrb[0].mxu0 %v974
        %v1066 = vpop.f32.mrb[0].mxu0
        %v1067 = vadd.f32 %v937, %v1066
        %v1068 = vpop.f32.mrb[0].mxu0
        %v1069 = vpop.f32.mrb[0].mxu0
        %v1070 = vadd.f32 %v937, %v1069
        %v1071 = vpop.f32.mrb[0].mxu0
        %1072 = vdwg.mxu0
        %1073 = vxpose.xlu0.b32.start [1/16] %v1011, 128
        %1074 = vxpose.xlu0.b32.cont [2/16] %v1014, 128
        %1075 = vxpose.xlu0.b32.cont [3/16] %v1019, 128
        %1076 = vxpose.xlu0.b32.cont [4/16] %v1022, 128
        %1077 = vxpose.xlu0.b32.cont [5/16] %v1027, 128
        %1078 = vxpose.xlu0.b32.cont [6/16] %v1030, 128
        %1079 = vxpose.xlu0.b32.cont [7/16] %v1035, 128
        %1080 = vxpose.xlu0.b32.cont [8/16] %v1038, 128
        %1081 = vxpose.xlu0.b32.cont [9/16] %v1043, 128
        %1082 = vxpose.xlu0.b32.cont [10/16] %v1046, 128
        %1083 = vxpose.xlu0.b32.cont [11/16] %v1051, 128
        %1084 = vxpose.xlu0.b32.cont [12/16] %v1054, 128
        %1085 = vxpose.xlu0.b32.cont [13/16] %v1059, 128
        %1086 = vxpose.xlu0.b32.cont [14/16] %v1062, 128
        %1087 = vxpose.xlu0.b32.cont [15/16] %v1067, 128
        %1088 = vxpose.xlu0.b32.end [16/16] %v1070, 128
        %v1089 = vpop.trf.xlu0
        %v1090 = vpop.trf.xlu0
        %v1091 = vpop.trf.xlu0
        %v1092 = vpop.trf.xlu0
        %v1093 = vpop.trf.xlu0
        %v1094 = vpop.trf.xlu0
        %v1095 = vpop.trf.xlu0
        %v1096 = vpop.trf.xlu0
        %v1097 = vpop.trf.xlu0
        %v1098 = vpop.trf.xlu0
        %v1099 = vpop.trf.xlu0
        %v1100 = vpop.trf.xlu0
        %v1101 = vpop.trf.xlu0
        %v1102 = vpop.trf.xlu0
        %v1103 = vpop.trf.xlu0
        %v1104 = vpop.trf.xlu0
        %1105 = vst [vmem:[%s349] sm:$0xff] %v1089
        %1106 = vst [vmem:[%s349 + $0x8] sm:$0xff] %v1090
        %1107 = vst [vmem:[%s349 + $0x10] sm:$0xff] %v1091
        %1108 = vst [vmem:[%s349 + $0x18] sm:$0xff] %v1092
        %s1109 = sand.u32 %s226, 1
        %s1110 = scalar_lea.sflag [#allocation3], %s1109
        %s1111 = sand.u32 %s226, 1
        %s1112 = smul.addr %s1111, 32
        %s1113 = scalar_lea.vmem [#allocation2], %s1112
        // Predicated region
        $region53: #{tpu_custom_call.1} parent=51 // pred_check
          %p1114 = pneg %p236
        $region54: #{tpu_custom_call.1} parent=51 // pred_check_branch
          %1116 = sbr.rel (%p1114) target = $region56
        $region55: #{tpu_custom_call.1} parent=51 // pred_region
          %s1118 = ssub.s32 512, 512
          %1119 = vsyncadd %s1110, %s1118
          %s1120 = smul.addr %s26, 4
          %s1121 = sadd.s32 %s27, %s1120
          %s1122 = smul.addr %s1121, 128
          %s1123 = scalar_lea.hbm %s8, %s1122
          %s1124 = sshll.u32 %s1113, 4
          %s1125 = int_to_ptr.vmem [resolvable:$true] %s1124
          %1130 = dma.vmem_to_hbm [thread:$0]  %s1125, 512, %s1123, %s1110, 128, 128, 8
        $region56: #{tpu_custom_call.1} parent=51 // pred_fallthru
          _
      $region52: #{tpu_custom_call.1} parent=5 // pred_fallthru
        _
      %p1131 = scmp.le.s32.totalorder 2, %s17
      // Predicated region
      $region57: #{tpu_custom_call.1} parent=5 // pred_check
        %p1132 = pneg %p1131
      $region58: #{tpu_custom_call.1} parent=5 // pred_check_branch
        %1134 = sbr.rel (%p1132) target = $region60
      $region59: #{tpu_custom_call.1} parent=5 // pred_region
        %s1135 = ssub.s32 %s17, 2
        // Predicated region
        $region61: #{tpu_custom_call.1} parent=59 // pred_check
          %p1136 = pneg %p242
        $region62: #{tpu_custom_call.1} parent=59 // pred_check_branch
          %1138 = sbr.rel (%p1136) target = $region64
        $region63: #{tpu_custom_call.1} parent=59 // pred_region
          %s1139 = sand.u32 %s227, 1
          %s1140 = scalar_lea.sflag [#allocation3], %s1139
          %s1141 = sand.u32 %s227, 1
          %s1142 = smul.addr %s1141, 32
          %s1143 = scalar_lea.vmem [#allocation2], %s1142
          %1144 = dma.done %s1140, 512
        $region64: #{tpu_custom_call.1} parent=59 // pred_fallthru
          _
      $region60: #{tpu_custom_call.1} parent=5 // pred_fallthru
        _
    $region6: #{tpu_custom_call.1} parent=1 // loop_footer
      %s21 = sadd.s32 1, %s17
    $region7: #{tpu_custom_call.1} parent=1 // loop_footer_branch
      %16 = sbr.rel target = $region3
    $region8: #{tpu_custom_call.1} parent=1 // loop_exit
      _
    %1145 = vsyncpa [#allocation3], 1
    %s1146 = scalar_lea.sflag [#allocation3], 1
    %1147 = vsyncpa %s1146, 1

</llo_original>
